<compile_context>
chip_gen: v5e
topology: v5e:2x2
jax: 0.10.0
libtpu: 0.0.40
codegen_flags: <defaults>
</compile_context>

<pallas_src>
import jax
import jax.numpy as jnp
from jax.experimental import pallas as pl
from jax.experimental.pallas import tpu as pltpu


def _dropout_columnwise_kernel(x_ref, m_ref, o_ref):
    # x_ref / o_ref: (TM, TN, C).  m_ref: (TM, 1, C) -- shared across the column axis.
    o_ref[...] = x_ref[...] * m_ref[...]


def _columnwise_mask(key, p, x):
    """nn.Dropout applied to ones_like(x[:, :, 0:1, :]): keep w.p. (1-p), scale 1/(1-p)."""
    B, R, _, C = x.shape
    if p >= 1.0:
        return jnp.zeros((B, R, 1, C), dtype=x.dtype)
    keep = jax.random.bernoulli(key, 1.0 - p, (B, R, 1, C))
    scale = jnp.asarray(1.0 / (1.0 - p), dtype=x.dtype)
    return keep.astype(x.dtype) * scale


def _choose_tiles(M, N, C, itemsize, budget_bytes):
    """Pick (TM, TN) so one x block (TM, TN, C) fits the byte budget.

    Preferred path keeps the full (N, C) face per row block (fully contiguous
    HBM DMAs).  Only if a single row does not fit do we tile the column axis,
    with TN a multiple of 8 to respect the sublane tiling constraint.
    """
    row_bytes = N * C * itemsize
    if row_bytes <= budget_bytes:
        TM = int(min(M, max(1, budget_bytes // row_bytes)))
        TN = N
    else:
        TM = 1
        TN = int(budget_bytes // (C * itemsize))
        TN = max(8, (TN // 8) * 8)          # second-to-last block dim: multiple of 8
        TN = min(TN, N)
    return TM, TN


def dropout_columnwise(x, p, key, training=True, *,
                       block_budget_bytes=8 * 1024 * 1024,
                       min_pallas_bytes=1 * 1024 * 1024):
    """Pallas implementation of FastFold DropoutColumnwise.forward."""
    if (not training) or p == 0.0:
        return x
    assert x.ndim == 4, "expected (B, R, N, C)"
    B, R, N, C = x.shape

    mask = _columnwise_mask(key, p, x)        # (B, R, 1, C), already scaled, x.dtype
    itemsize = jnp.dtype(x.dtype).itemsize

    if x.size * itemsize < min_pallas_bytes:
        # Tiny tensors: pallas_call launch/pipeline setup dominates; let XLA fuse it.
        return mask * x

    # Flatten (B, R) -> M: one long, evenly shardable "parallel" axis (v7x megacore).
    M = B * R
    x_flat = x.reshape(M, N, C)
    m_flat = mask.reshape(M, 1, C)

    TM, TN = _choose_tiles(M, N, C, itemsize, block_budget_bytes)
    grid = (pl.cdiv(M, TM), pl.cdiv(N, TN))

    # Double-buffered in/out/mask blocks plus headroom; clamp under v7x's 64 MiB VMEM.
    block_bytes = TM * TN * C * itemsize
    mask_bytes = TM * C * itemsize
    vmem_limit = 2 * (2 * block_bytes + mask_bytes) + (4 << 20)
    vmem_limit = int(min(max(vmem_limit, 16 << 20), 48 << 20))

    out = pl.pallas_call(
        _dropout_columnwise_kernel,
        out_shape=jax.ShapeDtypeStruct((M, N, C), x.dtype),
        grid=grid,
        in_specs=[
            pl.BlockSpec((TM, TN, C), lambda m, n: (m, n, 0)),
            pl.BlockSpec((TM, 1, C), lambda m, n: (m, 0, 0)),
        ],
        out_specs=pl.BlockSpec((TM, TN, C), lambda m, n: (m, n, 0)),
        # Output reuses x's HBM buffer: identical shape/dtype, and each block is
        # read before the same-index block is written back.
        input_output_aliases={0: 0},
        compiler_params=pltpu.CompilerParams(
            dimension_semantics=("parallel", "parallel"),
            vmem_limit_bytes=vmem_limit,
        ),
    )(x_flat, m_flat)

    return out.reshape(B, R, N, C)


if __name__ == "__main__":
    key = jax.random.PRNGKey(0)
    k_x, k_mask = jax.random.split(key)

    # x: (batch, rows, columns, channels) -- small, with a non-divisor row count
    # to exercise the ragged-tile path.  C=128 keeps the output lane-dense.
    B, R, N, C = 2, 5, 16, 128
    p = 0.25
    x = jax.random.normal(k_x, (B, R, N, C), dtype=jnp.float32)
    itemsize = jnp.dtype(x.dtype).itemsize

    # Reference (same key -> same mask) with plain jnp broadcasting, computed up front.
    ref = _columnwise_mask(k_mask, p, x) * x
    scale = 1.0 / (1.0 - p)

    def check(out):
        assert out.shape == x.shape and out.dtype == x.dtype
        assert bool(jnp.allclose(out, ref, rtol=1e-6, atol=1e-6)), "mismatch vs reference"
        # Dropout pattern must be identical across the column axis (dim 2),
        # and surviving entries must be x scaled by 1/(1-p).
        nz = out != 0
        assert bool(jnp.all(nz[:, :, :1, :] == nz)), "mask not shared column-wise"
        assert bool(jnp.allclose(jnp.where(nz, out, 0.0),
                                 jnp.where(nz, x * scale, 0.0),
                                 rtol=1e-6, atol=1e-6)), "kept values not scaled correctly"

    # 1) Main Pallas path (min_pallas_bytes=0 forces the kernel at this small size).
    out = jax.block_until_ready(
        dropout_columnwise(x, p=p, key=k_mask, training=True, min_pallas_bytes=0))
    check(out)

    # 2) Ragged row tiling: budget of 3 rows -> TM=3, grid_m=cdiv(10,3)=4 (ragged last block).
    out = jax.block_until_ready(
        dropout_columnwise(x, p=p, key=k_mask, training=True, min_pallas_bytes=0,
                           block_budget_bytes=3 * N * C * itemsize))
    check(out)

    # 3) Column-tiling fallback: budget below one row -> TM=1, TN=8, grid=(10, 2).
    out = jax.block_until_ready(
        dropout_columnwise(x, p=p, key=k_mask, training=True, min_pallas_bytes=0,
                           block_budget_bytes=(N // 2) * C * itemsize))
    check(out)

    # 4) Tiny-input fast path (plain XLA) and eval mode.
    out = jax.block_until_ready(dropout_columnwise(x, p=p, key=k_mask, training=True))
    check(out)
    assert dropout_columnwise(x, p=p, key=k_mask, training=False) is x

    print("KERNEL_OK")
</pallas_src>

<mosaic_0001>
module attributes {stable_mosaic.version = 11 : i64} {
  func.func @_dropout_columnwise_kernel(%arg0: i32, %arg1: i32, %arg2: memref<10x16x128xf32, #tpu.memory_space<vmem>>, %arg3: memref<10x1x128xf32, #tpu.memory_space<vmem>>, %arg4: memref<10x16x128xf32, #tpu.memory_space<vmem>>) attributes {dimension_semantics = [#tpu.dimension_semantics<parallel>, #tpu.dimension_semantics<parallel>], iteration_bounds = array<i64: 1, 1>, scalar_prefetch = 0 : i64, scratch_operands = 0 : i64, tpu.core_type = #tpu.core_type<tc>, window_params = [{transform_indices = @transform_0, window_bounds = array<i64: 10, 16, 128>}, {transform_indices = @transform_1, window_bounds = array<i64: 10, 1, 128>}, {transform_indices = @transform_2, window_bounds = array<i64: 10, 16, 128>}]} {
    %c0 = arith.constant 0 : index
    %c0_0 = arith.constant 0 : index
    %c0_1 = arith.constant 0 : index
    %0 = vector.load %arg2[%c0, %c0_0, %c0_1] : memref<10x16x128xf32, #tpu.memory_space<vmem>>, vector<10x16x128xf32>
    %c0_2 = arith.constant 0 : index
    %c0_3 = arith.constant 0 : index
    %c0_4 = arith.constant 0 : index
    %1 = vector.load %arg3[%c0_2, %c0_3, %c0_4] : memref<10x1x128xf32, #tpu.memory_space<vmem>>, vector<10x1x128xf32>
    %2 = vector.broadcast %1 : vector<10x1x128xf32> to vector<10x16x128xf32>
    %3 = arith.mulf %0, %2 : vector<10x16x128xf32>
    %c0_5 = arith.constant 0 : index
    %c0_6 = arith.constant 0 : index
    %c0_7 = arith.constant 0 : index
    %4 = vector.load %arg4[%c0_5, %c0_6, %c0_7] : memref<10x16x128xf32, #tpu.memory_space<vmem>>, vector<10x16x128xf32>
    tpu.vector_store %arg4[%c0_5, %c0_6, %c0_7], %3 {strides = array<i32>} : memref<10x16x128xf32, #tpu.memory_space<vmem>>, vector<10x16x128xf32>,
    return
  }
  func.func @transform_0(%arg0: i32, %arg1: i32) -> (i32, i32, i32) {
    %c0_i32 = arith.constant 0 : i32
    %c0_i32_0 = arith.constant 0 : i32
    return %arg0, %arg1, %c0_i32 : i32, i32, i32
  }
  func.func @transform_1(%arg0: i32, %arg1: i32) -> (i32, i32, i32) {
    %c0_i32 = arith.constant 0 : i32
    %c0_i32_0 = arith.constant 0 : i32
    %c0_i32_1 = arith.constant 0 : i32
    return %arg0, %c0_i32, %c0_i32_0 : i32, i32, i32
  }
  func.func @transform_2(%arg0: i32, %arg1: i32) -> (i32, i32, i32) {
    %c0_i32 = arith.constant 0 : i32
    %c0_i32_0 = arith.constant 0 : i32
    return %arg0, %arg1, %c0_i32 : i32, i32, i32
  }
}

</mosaic_0001>

<llo_original>
// kernel: tpu_custom_call.1
$region0: #{tpu_custom_call.1}
  #allocation0 [shape = 'u32[]', space=smem, size = 0x4, offset = 0x4, fixed_abs, tag = 'smem constant byte address 0x4 - core index']
  #allocation1 [shape = 'u32[72,128]{1,0:T(1,128)}', space=vmem, size = 0x9000, scoped, tag = 'internal scratch']
  %s0 = inlined_call_operand.hbm [shape: f32[10,16,128], index: 0, kind: input, shape index: {}, may-alias: {0,2}]
  %s1 = inlined_call_operand.vmem [shape: f32[10,1,128], index: 1, kind: input, shape index: {}]
  %s2 = inlined_call_operand.hbm [shape: f32[10,16,128], index: 2, kind: output, shape index: {}, may-alias: {0,2}]
  %s3 = sld [smem:[#allocation0]]
  $region22: #{tpu_custom_call.1} parent=0
    _
  %s5 = ssub.s32 1, %s3
  %s6 = scalar_select 0, %s5, %s3
  $region1: #{tpu_custom_call.1} parent=0
    #allocation2 [shape = 'u8[81920]{0}', space=vmem, size = 0x14000, scoped, tag = 'input window, operand 0, single buffered']
    #allocation3 [shape = 's32[1]{0}', space=sflag, size = 0x4, scoped, tag = 'scoped memory for tpu_custom_call.1']
    #allocation4 [shape = 's32[1]{0}', space=sflag, size = 0x4, scoped, tag = 'scoped memory for tpu_custom_call.1']
    #allocation5 [shape = 'u8[81920]{0}', space=vmem, size = 0x14000, scoped, tag = 'output window, operand 0, single buffered']
    %7 = vsyncpa [#allocation3], 0
    %8 = vsyncpa [#allocation4], 0
    // Predicated region
    $region2: #{tpu_custom_call.1} parent=1 // pred_check
      _
    $region3: #{tpu_custom_call.1} parent=1 // pred_check_branch
      %10 = sbr.rel (0) target = $region5
    $region4: #{tpu_custom_call.1} parent=1 // pred_region
      %12 = vsyncadd [#allocation3], 0
      %s13 = sshll.u32 %s0, 4
      %s14 = int_to_ptr.hbm [resolvable:$true] %s13
      %s15 = sshll.u32 [#allocation2], 4
      %s16 = int_to_ptr.vmem [resolvable:$true] %s15
      %21 = dma.hbm_to_vmem [thread:$0]  %s14, 2560, %s16, [#allocation3], 128, 128, 8
    $region5: #{tpu_custom_call.1} parent=1 // pred_fallthru
      _
    // Predicated region
    $region6: #{tpu_custom_call.1} parent=1 // pred_check
      _
    $region7: #{tpu_custom_call.1} parent=1 // pred_check_branch
      %23 = sbr.rel (0) target = $region9
    $region8: #{tpu_custom_call.1} parent=1 // pred_region
      _
    $region9: #{tpu_custom_call.1} parent=1 // pred_fallthru
      _
    // Predicated region
    $region10: #{tpu_custom_call.1} parent=1 // pred_check
      _
    $region11: #{tpu_custom_call.1} parent=1 // pred_check_branch
      %25 = sbr.rel (0) target = $region13
    $region12: #{tpu_custom_call.1} parent=1 // pred_region
      %27 = dma.done [#allocation3], 2560
    $region13: #{tpu_custom_call.1} parent=1 // pred_fallthru
      _
    %v28 = vld [vmem:[#allocation2] sm:$0xff]
    %v29 = vld [vmem:[#allocation2 + $0x8] sm:$0xff]
    %v30 = vld [vmem:[#allocation2 + $0x10] sm:$0xff]
    %v31 = vld [vmem:[#allocation2 + $0x18] sm:$0xff]
    %v32 = vld [vmem:[#allocation2 + $0x20] sm:$0xff]
    %v33 = vld [vmem:[#allocation2 + $0x28] sm:$0xff]
    %v34 = vld [vmem:[#allocation2 + $0x30] sm:$0xff]
    %v35 = vld [vmem:[#allocation2 + $0x38] sm:$0xff]
    %v36 = vld [vmem:[#allocation2 + $0x40] sm:$0xff]
    %v37 = vld [vmem:[#allocation2 + $0x48] sm:$0xff]
    %v38 = vld [vmem:[#allocation2 + $0x50] sm:$0xff]
    %v39 = vld [vmem:[#allocation2 + $0x58] sm:$0xff]
    %v40 = vld [vmem:[#allocation2 + $0x60] sm:$0xff]
    %v41 = vld [vmem:[#allocation2 + $0x68] sm:$0xff]
    %v42 = vld [vmem:[#allocation2 + $0x70] sm:$0xff]
    %v43 = vld [vmem:[#allocation2 + $0x78] sm:$0xff]
    %v44 = vld [vmem:[#allocation2 + $0x80] sm:$0xff]
    %v45 = vld [vmem:[#allocation2 + $0x88] sm:$0xff]
    %v46 = vld [vmem:[#allocation2 + $0x90] sm:$0xff]
    %v47 = vld [vmem:[#allocation2 + $0x98] sm:$0xff]
    %v48 = vld [vmem:[%s1] sm:$0x1]
    %v49 = vld [vmem:[%s1 + $0x1] sm:$0x1]
    %v50 = vld [vmem:[%s1 + $0x2] sm:$0x1]
    %v51 = vld [vmem:[%s1 + $0x3] sm:$0x1]
    %v52 = vld [vmem:[%s1 + $0x4] sm:$0x1]
    %v53 = vld [vmem:[%s1 + $0x5] sm:$0x1]
    %v54 = vld [vmem:[%s1 + $0x6] sm:$0x1]
    %v55 = vld [vmem:[%s1 + $0x7] sm:$0x1]
    %v56 = vld [vmem:[%s1 + $0x8] sm:$0x1]
    %v57 = vld [vmem:[%s1 + $0x9] sm:$0x1]
    %v68 = vperm.slane %v48, 0
    %v69 = vperm.slane %v49, 0
    %v70 = vperm.slane %v50, 0
    %v71 = vperm.slane %v51, 0
    %v72 = vperm.slane %v52, 0
    %v73 = vperm.slane %v53, 0
    %v74 = vperm.slane %v54, 0
    %v75 = vperm.slane %v55, 0
    %v76 = vperm.slane %v56, 0
    %v77 = vperm.slane %v57, 0
    %v88 = vmul.f32 %v28, %v68
    %v89 = vmul.f32 %v29, %v68
    %v90 = vmul.f32 %v30, %v69
    %v91 = vmul.f32 %v31, %v69
    %v92 = vmul.f32 %v32, %v70
    %v93 = vmul.f32 %v33, %v70
    %v94 = vmul.f32 %v34, %v71
    %v95 = vmul.f32 %v35, %v71
    %v96 = vmul.f32 %v36, %v72
    %v97 = vmul.f32 %v37, %v72
    %v98 = vmul.f32 %v38, %v73
    %v99 = vmul.f32 %v39, %v73
    %v100 = vmul.f32 %v40, %v74
    %v101 = vmul.f32 %v41, %v74
    %v102 = vmul.f32 %v42, %v75
    %v103 = vmul.f32 %v43, %v75
    %v104 = vmul.f32 %v44, %v76
    %v105 = vmul.f32 %v45, %v76
    %v106 = vmul.f32 %v46, %v77
    %v107 = vmul.f32 %v47, %v77
    %108 = vst [vmem:[#allocation5] sm:$0xff] %v88
    %109 = vst [vmem:[#allocation5 + $0x8] sm:$0xff] %v89
    %110 = vst [vmem:[#allocation5 + $0x10] sm:$0xff] %v90
    %111 = vst [vmem:[#allocation5 + $0x18] sm:$0xff] %v91
    %112 = vst [vmem:[#allocation5 + $0x20] sm:$0xff] %v92
    %113 = vst [vmem:[#allocation5 + $0x28] sm:$0xff] %v93
    %114 = vst [vmem:[#allocation5 + $0x30] sm:$0xff] %v94
    %115 = vst [vmem:[#allocation5 + $0x38] sm:$0xff] %v95
    %116 = vst [vmem:[#allocation5 + $0x40] sm:$0xff] %v96
    %117 = vst [vmem:[#allocation5 + $0x48] sm:$0xff] %v97
    %118 = vst [vmem:[#allocation5 + $0x50] sm:$0xff] %v98
    %119 = vst [vmem:[#allocation5 + $0x58] sm:$0xff] %v99
    %120 = vst [vmem:[#allocation5 + $0x60] sm:$0xff] %v100
    %121 = vst [vmem:[#allocation5 + $0x68] sm:$0xff] %v101
    %122 = vst [vmem:[#allocation5 + $0x70] sm:$0xff] %v102
    %123 = vst [vmem:[#allocation5 + $0x78] sm:$0xff] %v103
    %124 = vst [vmem:[#allocation5 + $0x80] sm:$0xff] %v104
    %125 = vst [vmem:[#allocation5 + $0x88] sm:$0xff] %v105
    %126 = vst [vmem:[#allocation5 + $0x90] sm:$0xff] %v106
    %127 = vst [vmem:[#allocation5 + $0x98] sm:$0xff] %v107
    // Predicated region
    $region14: #{tpu_custom_call.1} parent=1 // pred_check
      _
    $region15: #{tpu_custom_call.1} parent=1 // pred_check_branch
      %129 = sbr.rel (0) target = $region17
    $region16: #{tpu_custom_call.1} parent=1 // pred_region
      %131 = vsyncadd [#allocation4], 0
      %s132 = sshll.u32 [#allocation5], 4
      %s133 = int_to_ptr.vmem [resolvable:$true] %s132
      %s134 = sshll.u32 %s2, 4
      %s135 = int_to_ptr.hbm [resolvable:$true] %s134
      %140 = dma.vmem_to_hbm [thread:$0]  %s133, 2560, %s135, [#allocation4], 128, 128, 8
    $region17: #{tpu_custom_call.1} parent=1 // pred_fallthru
      _
    // Predicated region
    $region18: #{tpu_custom_call.1} parent=1 // pred_check
      _
    $region19: #{tpu_custom_call.1} parent=1 // pred_check_branch
      %142 = sbr.rel (0) target = $region21
    $region20: #{tpu_custom_call.1} parent=1 // pred_region
      %144 = dma.done [#allocation4], 2560
    $region21: #{tpu_custom_call.1} parent=1 // pred_fallthru
      _
    %145 = vsyncpa [#allocation3], 1
    %146 = vsyncpa [#allocation4], 1

</llo_original>
